<compile_context>
chip_gen: v6e
topology: v6e:2x2x1
jax: 0.10.0
libtpu: 0.0.40
codegen_flags: <defaults>
</compile_context>

<pallas_src>
import jax
import jax.numpy as jnp
from jax.experimental import pallas as pl
from jax.experimental.pallas import tpu as pltpu

_LANE = 128


def _round_up(x, m):
    return ((x + m - 1) // m) * m


def _pad_to(x, shape):
    pads = [(0, t - s) for s, t in zip(x.shape, shape)]
    if all(p == (0, 0) for p in pads):
        return x
    return jnp.pad(x, pads)


def actor_mlp_kernel(x_ref, w1_ref, b1_ref, w2_ref, b2_ref,
                     w3_ref, b3_ref, w4_ref, b4_ref, o_ref):
    cd = w1_ref.dtype                                   # bf16 compute dtype (MXU)
    x = x_ref[...].astype(cd)                           # (tb, S)

    # Linear1 + ReLU  (bf16 x bf16 -> f32 accumulate; epilogue in f32 on VPU)
    h = jnp.dot(x, w1_ref[...], preferred_element_type=jnp.float32)
    h = jnp.maximum(h + b1_ref[...], 0.0)               # (tb, Mp)

    # Linear2 + ReLU
    h = jnp.dot(h.astype(cd), w2_ref[...], preferred_element_type=jnp.float32)
    h = jnp.maximum(h + b2_ref[...], 0.0)               # (tb, Mp)

    # Linear3 + Hardswish:  z * clip(z + 3, 0, 6) / 6
    z = jnp.dot(h.astype(cd), w3_ref[...], preferred_element_type=jnp.float32)
    z = z + b3_ref[...]
    h = z * jnp.clip(z + 3.0, 0.0, 6.0) * (1.0 / 6.0)   # (tb, Mp)

    # Linear4 (logits, lane-dense padded output, f32)
    out = jnp.dot(h.astype(cd), w4_ref[...], preferred_element_type=jnp.float32)
    o_ref[...] = (out + b4_ref[...]).astype(o_ref.dtype)  # (tb, Ap)


def actor_discrete_ppo_forward(state, w1, b1, w2, b2, w3, b3, w4, b4, *, tb=512):
    """Forward pass of ActorDiscretePPO.net.  Weights are (in, out) = torch W.T.

    Returns f32 logits of shape (batch, action_dim).
    """
    B, S = state.shape
    M = w1.shape[1]
    A = w4.shape[1]
    assert w1.shape == (S, M) and b1.shape == (1, M)
    assert w2.shape == (M, M) and b2.shape == (1, M)
    assert w3.shape == (M, M) and b3.shape == (1, M)
    assert w4.shape == (M, A) and b4.shape == (1, A)

    # Pad hidden / logits dims to the 128-lane width (zero padding is inert
    # through ReLU / Hardswish / zero weight rows) and cast weights to bf16.
    Mp = _round_up(M, _LANE)
    Ap = _round_up(A, _LANE)
    w1p = _pad_to(w1, (S, Mp)).astype(jnp.bfloat16)
    w2p = _pad_to(w2, (Mp, Mp)).astype(jnp.bfloat16)
    w3p = _pad_to(w3, (Mp, Mp)).astype(jnp.bfloat16)
    w4p = _pad_to(w4, (Mp, Ap)).astype(jnp.bfloat16)
    b1p = _pad_to(b1, (1, Mp)).astype(jnp.float32)
    b2p = _pad_to(b2, (1, Mp)).astype(jnp.float32)
    b3p = _pad_to(b3, (1, Mp)).astype(jnp.float32)
    b4p = _pad_to(b4, (1, Ap)).astype(jnp.float32)

    # Batch tile: big enough to amortize the ~0.35us/step grid overhead, but
    # split into >= 2 grid steps whenever possible so v7x's 2nd TC gets work.
    if B <= 2 * tb:
        tb = max(8, _round_up(pl.cdiv(B, 2), 8))
    tb = min(tb, _round_up(B, 8))
    grid = (pl.cdiv(B, tb),)

    flops = 2 * B * (S * Mp + 2 * Mp * Mp + Mp * Ap)
    bytes_accessed = (4 * B * (S + Ap)                      # f32 activations in/out
                      + 2 * (S * Mp + 2 * Mp * Mp + Mp * Ap)  # bf16 weights
                      + 4 * (3 * Mp + Ap))                  # f32 biases

    # Explicit VMEM budget (v5e default scoped limit is only 16 MiB):
    # double-buffered weights/biases/IO tiles + activation scratch + headroom.
    vmem_est = (2 * 2 * (S * Mp + 2 * Mp * Mp + Mp * Ap)    # bf16 weights x2 bufs
                + 2 * 4 * (3 * Mp + Ap)                     # f32 biases  x2 bufs
                + 2 * 4 * tb * (S + Ap)                     # f32 in/out tiles x2
                + 6 * 4 * tb * Mp                           # f32/bf16 activations
                + (4 << 20))                                # headroom
    vmem_limit = int(max(32 << 20, min(vmem_est, 100 << 20)))

    out = pl.pallas_call(
        actor_mlp_kernel,
        out_shape=jax.ShapeDtypeStruct((B, Ap), jnp.float32),
        grid_spec=pltpu.PrefetchScalarGridSpec(
            num_scalar_prefetch=0,
            grid=grid,
            in_specs=[
                pl.BlockSpec((tb, S), lambda i: (i, 0)),    # state tile over batch
                pl.BlockSpec((S, Mp), lambda i: (0, 0)),    # W1 (resident, bf16)
                pl.BlockSpec((1, Mp), lambda i: (0, 0)),    # b1 (f32)
                pl.BlockSpec((Mp, Mp), lambda i: (0, 0)),   # W2 (resident, bf16)
                pl.BlockSpec((1, Mp), lambda i: (0, 0)),    # b2
                pl.BlockSpec((Mp, Mp), lambda i: (0, 0)),   # W3 (resident, bf16)
                pl.BlockSpec((1, Mp), lambda i: (0, 0)),    # b3
                pl.BlockSpec((Mp, Ap), lambda i: (0, 0)),   # W4 (resident, bf16)
                pl.BlockSpec((1, Ap), lambda i: (0, 0)),    # b4
            ],
            out_specs=pl.BlockSpec((tb, Ap), lambda i: (i, 0)),
        ),
        compiler_params=pltpu.CompilerParams(
            dimension_semantics=("parallel",),
            vmem_limit_bytes=vmem_limit),
        cost_estimate=pl.CostEstimate(
            flops=flops, transcendentals=0, bytes_accessed=bytes_accessed),
    )(state, w1p, b1p, w2p, b2p, w3p, b3p, w4p, b4p)

    return out[:, :A] if Ap != A else out


def actor_discrete_ppo_ref(x, w1, b1, w2, b2, w3, b3, w4, b4):
    h = jnp.maximum(x @ w1 + b1, 0.0)
    h = jnp.maximum(h @ w2 + b2, 0.0)
    z = h @ w3 + b3
    h = z * jnp.clip(z + 3.0, 0.0, 6.0) / 6.0          # Hardswish
    return h @ w4 + b4


if __name__ == "__main__":
    batch = 16
    state_dim = 8
    mid_dim = 32
    action_dim = 4

    key = jax.random.PRNGKey(0)
    kx, k1w, k1b, k2w, k2b, k3w, k3b, k4w, k4b = jax.random.split(key, 9)

    state = jax.random.normal(kx, (batch, state_dim), dtype=jnp.float32)

    # PyTorch-Linear-like uniform fan-in init; weights stored as (in, out).
    s1 = 1.0 / jnp.sqrt(state_dim)
    sm = 1.0 / jnp.sqrt(mid_dim)
    w1 = jax.random.uniform(k1w, (state_dim, mid_dim), jnp.float32, -s1, s1)
    b1 = jax.random.uniform(k1b, (1, mid_dim), jnp.float32, -s1, s1)
    w2 = jax.random.uniform(k2w, (mid_dim, mid_dim), jnp.float32, -sm, sm)
    b2 = jax.random.uniform(k2b, (1, mid_dim), jnp.float32, -sm, sm)
    w3 = jax.random.uniform(k3w, (mid_dim, mid_dim), jnp.float32, -sm, sm)
    b3 = jax.random.uniform(k3b, (1, mid_dim), jnp.float32, -sm, sm)
    w4 = jax.random.uniform(k4w, (mid_dim, action_dim), jnp.float32, -sm, sm)
    b4 = jax.random.uniform(k4b, (1, action_dim), jnp.float32, -sm, sm)

    out = actor_discrete_ppo_forward(state, w1, b1, w2, b2, w3, b3, w4, b4)
    out = jax.block_until_ready(out)

    ref = actor_discrete_ppo_ref(state, w1, b1, w2, b2, w3, b3, w4, b4)
    assert out.shape == (batch, action_dim), out.shape
    assert out.dtype == jnp.float32, out.dtype
    # bf16 MXU operands (f32 accumulation) -> relaxed tolerance vs f32 reference.
    assert jnp.allclose(out, ref, atol=3e-2, rtol=3e-2), "mismatch vs reference"

    print("KERNEL_OK")
</pallas_src>

<mosaic_0001>
module attributes {stable_mosaic.version = 11 : i64} {
  func.func @actor_mlp_kernel(%arg0: i32, %arg1: memref<8x8xf32, #tpu.memory_space<vmem>>, %arg2: memref<8x128xbf16, #tpu.memory_space<vmem>>, %arg3: memref<1x128xf32, #tpu.memory_space<vmem>>, %arg4: memref<128x128xbf16, #tpu.memory_space<vmem>>, %arg5: memref<1x128xf32, #tpu.memory_space<vmem>>, %arg6: memref<128x128xbf16, #tpu.memory_space<vmem>>, %arg7: memref<1x128xf32, #tpu.memory_space<vmem>>, %arg8: memref<128x128xbf16, #tpu.memory_space<vmem>>, %arg9: memref<1x128xf32, #tpu.memory_space<vmem>>, %arg10: memref<8x128xf32, #tpu.memory_space<vmem>>) attributes {dimension_semantics = [#tpu.dimension_semantics<parallel>], iteration_bounds = array<i64: 2>, scalar_prefetch = 0 : i64, scratch_operands = 0 : i64, tpu.core_type = #tpu.core_type<tc>, window_params = [{transform_indices = @transform_0, window_bounds = array<i64: 8, 8>}, {pipeline_mode = #tpu.pipeline_mode<synchronous>, transform_indices = @transform_1, window_bounds = array<i64: 8, 128>}, {pipeline_mode = #tpu.pipeline_mode<synchronous>, transform_indices = @transform_2, window_bounds = array<i64: 1, 128>}, {pipeline_mode = #tpu.pipeline_mode<synchronous>, transform_indices = @transform_3, window_bounds = array<i64: 128, 128>}, {pipeline_mode = #tpu.pipeline_mode<synchronous>, transform_indices = @transform_4, window_bounds = array<i64: 1, 128>}, {pipeline_mode = #tpu.pipeline_mode<synchronous>, transform_indices = @transform_5, window_bounds = array<i64: 128, 128>}, {pipeline_mode = #tpu.pipeline_mode<synchronous>, transform_indices = @transform_6, window_bounds = array<i64: 1, 128>}, {pipeline_mode = #tpu.pipeline_mode<synchronous>, transform_indices = @transform_7, window_bounds = array<i64: 128, 128>}, {pipeline_mode = #tpu.pipeline_mode<synchronous>, transform_indices = @transform_8, window_bounds = array<i64: 1, 128>}, {transform_indices = @transform_9, window_bounds = array<i64: 8, 128>}]} {
    %c0 = arith.constant 0 : index
    %c0_0 = arith.constant 0 : index
    %0 = vector.load %arg1[%c0, %c0_0] : memref<8x8xf32, #tpu.memory_space<vmem>>, vector<8x8xf32>
    %1 = arith.truncf %0 : vector<8x8xf32> to vector<8x8xbf16>
    %c0_1 = arith.constant 0 : index
    %c0_2 = arith.constant 0 : index
    %2 = vector.load %arg2[%c0_1, %c0_2] : memref<8x128xbf16, #tpu.memory_space<vmem>>, vector<8x128xbf16>
    %cst = arith.constant dense<0.000000e+00> : vector<8x128xf32>
    %3 = tpu.matmul %1, %2, %cst {dimension_numbers = #tpu.dot_dimension_numbers<[1], [0], [0], [1], [0, 0, 1, 1], [], []>} : vector<8x8xbf16>, vector<8x128xbf16>, vector<8x128xf32> -> vector<8x128xf32>
    %c0_3 = arith.constant 0 : index
    %c0_4 = arith.constant 0 : index
    %4 = vector.load %arg3[%c0_3, %c0_4] : memref<1x128xf32, #tpu.memory_space<vmem>>, vector<1x128xf32>
    %5 = vector.broadcast %4 : vector<1x128xf32> to vector<8x128xf32>
    %6 = arith.addf %3, %5 : vector<8x128xf32>
    %cst_5 = arith.constant 0.000000e+00 : f32
    %7 = vector.broadcast %cst_5 : f32 to vector<8x128xf32>
    %8 = arith.maximumf %6, %7 : vector<8x128xf32>
    %9 = arith.truncf %8 : vector<8x128xf32> to vector<8x128xbf16>
    %c0_6 = arith.constant 0 : index
    %c0_7 = arith.constant 0 : index
    %10 = vector.load %arg4[%c0_6, %c0_7] : memref<128x128xbf16, #tpu.memory_space<vmem>>, vector<128x128xbf16>
    %cst_8 = arith.constant dense<0.000000e+00> : vector<8x128xf32>
    %11 = tpu.matmul %9, %10, %cst_8 {dimension_numbers = #tpu.dot_dimension_numbers<[1], [0], [0], [1], [0, 0, 1, 1], [], []>} : vector<8x128xbf16>, vector<128x128xbf16>, vector<8x128xf32> -> vector<8x128xf32>
    %c0_9 = arith.constant 0 : index
    %c0_10 = arith.constant 0 : index
    %12 = vector.load %arg5[%c0_9, %c0_10] : memref<1x128xf32, #tpu.memory_space<vmem>>, vector<1x128xf32>
    %13 = vector.broadcast %12 : vector<1x128xf32> to vector<8x128xf32>
    %14 = arith.addf %11, %13 : vector<8x128xf32>
    %cst_11 = arith.constant 0.000000e+00 : f32
    %15 = vector.broadcast %cst_11 : f32 to vector<8x128xf32>
    %16 = arith.maximumf %14, %15 : vector<8x128xf32>
    %17 = arith.truncf %16 : vector<8x128xf32> to vector<8x128xbf16>
    %c0_12 = arith.constant 0 : index
    %c0_13 = arith.constant 0 : index
    %18 = vector.load %arg6[%c0_12, %c0_13] : memref<128x128xbf16, #tpu.memory_space<vmem>>, vector<128x128xbf16>
    %cst_14 = arith.constant dense<0.000000e+00> : vector<8x128xf32>
    %19 = tpu.matmul %17, %18, %cst_14 {dimension_numbers = #tpu.dot_dimension_numbers<[1], [0], [0], [1], [0, 0, 1, 1], [], []>} : vector<8x128xbf16>, vector<128x128xbf16>, vector<8x128xf32> -> vector<8x128xf32>
    %c0_15 = arith.constant 0 : index
    %c0_16 = arith.constant 0 : index
    %20 = vector.load %arg7[%c0_15, %c0_16] : memref<1x128xf32, #tpu.memory_space<vmem>>, vector<1x128xf32>
    %21 = vector.broadcast %20 : vector<1x128xf32> to vector<8x128xf32>
    %22 = arith.addf %19, %21 : vector<8x128xf32>
    %cst_17 = arith.constant 3.000000e+00 : f32
    %23 = vector.broadcast %cst_17 : f32 to vector<8x128xf32>
    %24 = arith.addf %22, %23 : vector<8x128xf32>
    %cst_18 = arith.constant 0.000000e+00 : f32
    %cst_19 = arith.constant 6.000000e+00 : f32
    %25 = vector.broadcast %cst_18 : f32 to vector<8x128xf32>
    %26 = arith.maximumf %25, %24 : vector<8x128xf32>
    %27 = vector.broadcast %cst_19 : f32 to vector<8x128xf32>
    %28 = arith.minimumf %27, %26 : vector<8x128xf32>
    %29 = arith.mulf %22, %28 : vector<8x128xf32>
    %cst_20 = arith.constant 0.166666672 : f32
    %30 = vector.broadcast %cst_20 : f32 to vector<8x128xf32>
    %31 = arith.mulf %29, %30 : vector<8x128xf32>
    %32 = arith.truncf %31 : vector<8x128xf32> to vector<8x128xbf16>
    %c0_21 = arith.constant 0 : index
    %c0_22 = arith.constant 0 : index
    %33 = vector.load %arg8[%c0_21, %c0_22] : memref<128x128xbf16, #tpu.memory_space<vmem>>, vector<128x128xbf16>
    %cst_23 = arith.constant dense<0.000000e+00> : vector<8x128xf32>
    %34 = tpu.matmul %32, %33, %cst_23 {dimension_numbers = #tpu.dot_dimension_numbers<[1], [0], [0], [1], [0, 0, 1, 1], [], []>} : vector<8x128xbf16>, vector<128x128xbf16>, vector<8x128xf32> -> vector<8x128xf32>
    %c0_24 = arith.constant 0 : index
    %c0_25 = arith.constant 0 : index
    %35 = vector.load %arg9[%c0_24, %c0_25] : memref<1x128xf32, #tpu.memory_space<vmem>>, vector<1x128xf32>
    %36 = vector.broadcast %35 : vector<1x128xf32> to vector<8x128xf32>
    %37 = arith.addf %34, %36 : vector<8x128xf32>
    %c0_26 = arith.constant 0 : index
    %c0_27 = arith.constant 0 : index
    %38 = vector.load %arg10[%c0_26, %c0_27] : memref<8x128xf32, #tpu.memory_space<vmem>>, vector<8x128xf32>
    tpu.vector_store %arg10[%c0_26, %c0_27], %37 {strides = array<i32>} : memref<8x128xf32, #tpu.memory_space<vmem>>, vector<8x128xf32>,
    return
  }
  func.func @transform_0(%arg0: i32) -> (i32, i32) {
    %c0_i32 = arith.constant 0 : i32
    %c0_i32_0 = arith.constant 0 : i32
    return %arg0, %c0_i32 : i32, i32
  }
  func.func @transform_1(%arg0: i32) -> (i32, i32) {
    %c0_i32 = arith.constant 0 : i32
    %c0_i32_0 = arith.constant 0 : i32
    %c0_i32_1 = arith.constant 0 : i32
    return %c0_i32, %c0_i32_0 : i32, i32
  }
  func.func @transform_2(%arg0: i32) -> (i32, i32) {
    %c0_i32 = arith.constant 0 : i32
    %c0_i32_0 = arith.constant 0 : i32
    %c0_i32_1 = arith.constant 0 : i32
    return %c0_i32, %c0_i32_0 : i32, i32
  }
  func.func @transform_3(%arg0: i32) -> (i32, i32) {
    %c0_i32 = arith.constant 0 : i32
    %c0_i32_0 = arith.constant 0 : i32
    %c0_i32_1 = arith.constant 0 : i32
    return %c0_i32, %c0_i32_0 : i32, i32
  }
  func.func @transform_4(%arg0: i32) -> (i32, i32) {
    %c0_i32 = arith.constant 0 : i32
    %c0_i32_0 = arith.constant 0 : i32
    %c0_i32_1 = arith.constant 0 : i32
    return %c0_i32, %c0_i32_0 : i32, i32
  }
  func.func @transform_5(%arg0: i32) -> (i32, i32) {
    %c0_i32 = arith.constant 0 : i32
    %c0_i32_0 = arith.constant 0 : i32
    %c0_i32_1 = arith.constant 0 : i32
    return %c0_i32, %c0_i32_0 : i32, i32
  }
  func.func @transform_6(%arg0: i32) -> (i32, i32) {
    %c0_i32 = arith.constant 0 : i32
    %c0_i32_0 = arith.constant 0 : i32
    %c0_i32_1 = arith.constant 0 : i32
    return %c0_i32, %c0_i32_0 : i32, i32
  }
  func.func @transform_7(%arg0: i32) -> (i32, i32) {
    %c0_i32 = arith.constant 0 : i32
    %c0_i32_0 = arith.constant 0 : i32
    %c0_i32_1 = arith.constant 0 : i32
    return %c0_i32, %c0_i32_0 : i32, i32
  }
  func.func @transform_8(%arg0: i32) -> (i32, i32) {
    %c0_i32 = arith.constant 0 : i32
    %c0_i32_0 = arith.constant 0 : i32
    %c0_i32_1 = arith.constant 0 : i32
    return %c0_i32, %c0_i32_0 : i32, i32
  }
  func.func @transform_9(%arg0: i32) -> (i32, i32) {
    %c0_i32 = arith.constant 0 : i32
    %c0_i32_0 = arith.constant 0 : i32
    return %arg0, %c0_i32 : i32, i32
  }
}

</mosaic_0001>

<llo_original>
// kernel: tpu_custom_call.1
$region0: #{tpu_custom_call.1}
  #allocation0 [shape = 'u32[]', space=smem, size = 0x4, offset = 0x4, fixed_abs, tag = 'smem constant byte address 0x4 - core index']
  #allocation1 [shape = 'u32[144,128]{1,0:T(1,128)}', space=vmem, size = 0x12000, scoped, tag = 'internal scratch']
  %s0 = inlined_call_operand.vmem [shape: f32[16,8], index: 0, kind: input, shape index: {}]
  %s1 = inlined_call_operand.vmem [shape: bf16[8,128], index: 1, kind: input, shape index: {}]
  %s2 = inlined_call_operand.vmem [shape: f32[1,128], index: 2, kind: input, shape index: {}]
  %s3 = inlined_call_operand.hbm [shape: bf16[128,128], index: 3, kind: input, shape index: {}]
  %s4 = inlined_call_operand.vmem [shape: f32[1,128], index: 4, kind: input, shape index: {}]
  %s5 = inlined_call_operand.hbm [shape: bf16[128,128], index: 5, kind: input, shape index: {}]
  %s6 = inlined_call_operand.vmem [shape: f32[1,128], index: 6, kind: input, shape index: {}]
  %s7 = inlined_call_operand.hbm [shape: bf16[128,128], index: 7, kind: input, shape index: {}]
  %s8 = inlined_call_operand.vmem [shape: f32[1,128], index: 8, kind: input, shape index: {}]
  %s9 = inlined_call_operand.hbm [shape: f32[16,128], index: 9, kind: output, shape index: {}]
  %s10 = sld [smem:[#allocation0]]
  $region81: #{tpu_custom_call.1} parent=0
    _
  %s12 = ssub.s32 1, %s10
  %s13 = scalar_select 0, %s12, %s10
  $region1: #{tpu_custom_call.1} parent=0
    #allocation2 [shape = 'u8[32768]{0}', space=vmem, size = 0x8000, scoped, tag = 'input window, operand 3, single buffered']
    #allocation3 [shape = 's32[2]{0}', space=sflag, size = 0x8, scoped, tag = 'scoped memory for tpu_custom_call.1']
    #allocation4 [shape = 's32[2]{0}', space=sflag, size = 0x8, scoped, tag = 'scoped memory for tpu_custom_call.1']
    #allocation5 [shape = 'u8[32768]{0}', space=vmem, size = 0x8000, scoped, tag = 'input window, operand 5, single buffered']
    #allocation6 [shape = 's32[1]{0}', space=sflag, size = 0x4, scoped, tag = 'scoped memory for tpu_custom_call.1']
    #allocation7 [shape = 'u8[32768]{0}', space=vmem, size = 0x8000, scoped, tag = 'input window, operand 7, single buffered']
    #allocation8 [shape = 'u8[8192]{0}', space=vmem, size = 0x2000, scoped, tag = 'output window, operand 0']
    %14 = vsyncpa [#allocation3], 0
    %15 = vsyncpa [#allocation6], 0
    %16 = vsyncpa [#allocation4], 0
    %s17 = scalar_lea.sflag [#allocation4], 1
    %18 = vsyncpa %s17, 0
    loop: start=0, step=1, limit=4
    $region2: #{tpu_custom_call.1} parent=1 // loop_pre_header
      _
    $region3: #{tpu_custom_call.1} parent=1 // loop_header
      %s20 = sphi 0, %s24
      %p21 = scmp.ge.s32.totalorder %s20, 4
      %s30 = sphi 0, %s32
      %s33 = sphi 0, %s30
      %s34 = sphi 0, %s33
      %s50 = sphi 0, %s34
      %s54 = sphi 0, %s54
      %s56 = sphi 0, %s54
      %s57 = sphi 0, %s56
      %s71 = sphi 0, %s57
      %s75 = sphi 0, %s75
      %s77 = sphi 0, %s75
      %s78 = sphi 0, %s77
      %s92 = sphi 0, %s78
      %s96 = sphi 0, %s96
      %s98 = sphi 0, %s96
      %s99 = sphi 0, %s98
      %s113 = sphi 0, %s99
      %s117 = sphi 0, %s117
      %s119 = sphi 0, %s117
      %s120 = sphi 0, %s119
      %s134 = sphi 0, %s120
      %s138 = sphi 0, %s138
      %s140 = sphi 0, %s138
      %s141 = sphi 0, %s140
      %s155 = sphi 0, %s141
      %s159 = sphi 0, %s159
      %s161 = sphi 0, %s159
      %s162 = sphi 0, %s161
      %s176 = sphi 0, %s162
      %s180 = sphi 0, %s180
      %s182 = sphi 0, %s180
      %s183 = sphi 0, %s182
      %s197 = sphi 0, %s183
      %s201 = sphi 0, %s201
      %s203 = sphi 0, %s201
      %s204 = sphi 0, %s203
      %s218 = sphi 0, %s204
      %s224 = sphi 0, %s226
      %s227 = sphi 0, %s224
      %s228 = sphi 0, %s227
      %s244 = sphi 0, %s228
    $region4: #{tpu_custom_call.1} parent=1 // loop_header_branch
      %23 = sbr.rel (%p21) target = $region8
    $region5: #{tpu_custom_call.1} parent=1 // loop_body
      %s25 = ssub.s32 %s20, 1
      %s26 = ssub.s32 %s20, 2
      %s27 = sadd.s32 %s20, 1
      %s28 = ssub.s32 %s20, %s27
      %p29 = scmp.eq.s32.totalorder %s28, 0
      %s31 = sadd.s32 %s30, 1
      %s32 = scalar_select %p29, %s30, %s31
      %p35 = pneg %p29
      %p36 = scmp.eq.s32.totalorder %s20, 1
      %p37 = por %p35, %p36
      %p38 = scmp.ne.s32.totalorder %s30, %s33
      %p39 = scmp.eq.s32.totalorder %s20, 0
      %p40 = por %p38, %p39
      %p41 = scmp.ne.s32.totalorder %s30, %s33
      %p42 = scmp.eq.s32.totalorder %s25, 1
      %p43 = por %p41, %p42
      %p44 = scmp.ne.s32.totalorder %s33, %s34
      %p45 = scmp.eq.s32.totalorder %s25, 0
      %p46 = por %p44, %p45
      %p47 = scmp.ne.s32.totalorder %s33, %s34
      %p48 = scmp.eq.s32.totalorder %s26, 1
      %p49 = por %p47, %p48
      %p51 = scmp.ne.s32.totalorder %s34, %s50
      %p52 = scmp.eq.s32.totalorder %s26, 0
      %p53 = por %p51, %p52
      %s55 = sadd.s32 %s54, 1
      %p58 = scmp.eq.s32.totalorder %s20, 1
      %p59 = scmp.ne.s32.totalorder %s54, %s56
      %p60 = scmp.eq.s32.totalorder %s20, 0
      %p61 = por %p59, %p60
      %p62 = scmp.ne.s32.totalorder %s54, %s56
      %p63 = scmp.eq.s32.totalorder %s25, 1
      %p64 = por %p62, %p63
      %p65 = scmp.ne.s32.totalorder %s56, %s57
      %p66 = scmp.eq.s32.totalorder %s25, 0
      %p67 = por %p65, %p66
      %p68 = scmp.ne.s32.totalorder %s56, %s57
      %p69 = scmp.eq.s32.totalorder %s26, 1
      %p70 = por %p68, %p69
      %p72 = scmp.ne.s32.totalorder %s57, %s71
      %p73 = scmp.eq.s32.totalorder %s26, 0
      %p74 = por %p72, %p73
      %s76 = sadd.s32 %s75, 1
      %p79 = scmp.eq.s32.totalorder %s20, 1
      %p80 = scmp.ne.s32.totalorder %s75, %s77
      %p81 = scmp.eq.s32.totalorder %s20, 0
      %p82 = por %p80, %p81
      %p83 = scmp.ne.s32.totalorder %s75, %s77
      %p84 = scmp.eq.s32.totalorder %s25, 1
      %p85 = por %p83, %p84
      %p86 = scmp.ne.s32.totalorder %s77, %s78
      %p87 = scmp.eq.s32.totalorder %s25, 0
      %p88 = por %p86, %p87
      %p89 = scmp.ne.s32.totalorder %s77, %s78
      %p90 = scmp.eq.s32.totalorder %s26, 1
      %p91 = por %p89, %p90
      %p93 = scmp.ne.s32.totalorder %s78, %s92
      %p94 = scmp.eq.s32.totalorder %s26, 0
      %p95 = por %p93, %p94
      %s97 = sadd.s32 %s96, 1
      %p100 = scmp.eq.s32.totalorder %s20, 1
      %p101 = scmp.ne.s32.totalorder %s96, %s98
      %p102 = scmp.eq.s32.totalorder %s20, 0
      %p103 = por %p101, %p102
      %p104 = scmp.ne.s32.totalorder %s96, %s98
      %p105 = scmp.eq.s32.totalorder %s25, 1
      %p106 = por %p104, %p105
      %p107 = scmp.ne.s32.totalorder %s98, %s99
      %p108 = scmp.eq.s32.totalorder %s25, 0
      %p109 = por %p107, %p108
      %p110 = scmp.ne.s32.totalorder %s98, %s99
      %p111 = scmp.eq.s32.totalorder %s26, 1
      %p112 = por %p110, %p111
      %p114 = scmp.ne.s32.totalorder %s99, %s113
      %p115 = scmp.eq.s32.totalorder %s26, 0
      %p116 = por %p114, %p115
      %s118 = sadd.s32 %s117, 1
      %p121 = scmp.eq.s32.totalorder %s20, 1
      %p122 = scmp.ne.s32.totalorder %s117, %s119
      %p123 = scmp.eq.s32.totalorder %s20, 0
      %p124 = por %p122, %p123
      %p125 = scmp.ne.s32.totalorder %s117, %s119
      %p126 = scmp.eq.s32.totalorder %s25, 1
      %p127 = por %p125, %p126
      %p128 = scmp.ne.s32.totalorder %s119, %s120
      %p129 = scmp.eq.s32.totalorder %s25, 0
      %p130 = por %p128, %p129
      %p131 = scmp.ne.s32.totalorder %s119, %s120
      %p132 = scmp.eq.s32.totalorder %s26, 1
      %p133 = por %p131, %p132
      %p135 = scmp.ne.s32.totalorder %s120, %s134
      %p136 = scmp.eq.s32.totalorder %s26, 0
      %p137 = por %p135, %p136
      %s139 = sadd.s32 %s138, 1
      %p142 = scmp.eq.s32.totalorder %s20, 1
      %p143 = scmp.ne.s32.totalorder %s138, %s140
      %p144 = scmp.eq.s32.totalorder %s20, 0
      %p145 = por %p143, %p144
      %p146 = scmp.ne.s32.totalorder %s138, %s140
      %p147 = scmp.eq.s32.totalorder %s25, 1
      %p148 = por %p146, %p147
      %p149 = scmp.ne.s32.totalorder %s140, %s141
      %p150 = scmp.eq.s32.totalorder %s25, 0
      %p151 = por %p149, %p150
      %p152 = scmp.ne.s32.totalorder %s140, %s141
      %p153 = scmp.eq.s32.totalorder %s26, 1
      %p154 = por %p152, %p153
      %p156 = scmp.ne.s32.totalorder %s141, %s155
      %p157 = scmp.eq.s32.totalorder %s26, 0
      %p158 = por %p156, %p157
      %s160 = sadd.s32 %s159, 1
      %p163 = scmp.eq.s32.totalorder %s20, 1
      %p164 = scmp.ne.s32.totalorder %s159, %s161
      %p165 = scmp.eq.s32.totalorder %s20, 0
      %p166 = por %p164, %p165
      %p167 = scmp.ne.s32.totalorder %s159, %s161
      %p168 = scmp.eq.s32.totalorder %s25, 1
      %p169 = por %p167, %p168
      %p170 = scmp.ne.s32.totalorder %s161, %s162
      %p171 = scmp.eq.s32.totalorder %s25, 0
      %p172 = por %p170, %p171
      %p173 = scmp.ne.s32.totalorder %s161, %s162
      %p174 = scmp.eq.s32.totalorder %s26, 1
      %p175 = por %p173, %p174
      %p177 = scmp.ne.s32.totalorder %s162, %s176
      %p178 = scmp.eq.s32.totalorder %s26, 0
      %p179 = por %p177, %p178
      %s181 = sadd.s32 %s180, 1
      %p184 = scmp.eq.s32.totalorder %s20, 1
      %p185 = scmp.ne.s32.totalorder %s180, %s182
      %p186 = scmp.eq.s32.totalorder %s20, 0
      %p187 = por %p185, %p186
      %p188 = scmp.ne.s32.totalorder %s180, %s182
      %p189 = scmp.eq.s32.totalorder %s25, 1
      %p190 = por %p188, %p189
      %p191 = scmp.ne.s32.totalorder %s182, %s183
      %p192 = scmp.eq.s32.totalorder %s25, 0
      %p193 = por %p191, %p192
      %p194 = scmp.ne.s32.totalorder %s182, %s183
      %p195 = scmp.eq.s32.totalorder %s26, 1
      %p196 = por %p194, %p195
      %p198 = scmp.ne.s32.totalorder %s183, %s197
      %p199 = scmp.eq.s32.totalorder %s26, 0
      %p200 = por %p198, %p199
      %s202 = sadd.s32 %s201, 1
      %p205 = scmp.eq.s32.totalorder %s20, 1
      %p206 = scmp.ne.s32.totalorder %s201, %s203
      %p207 = scmp.eq.s32.totalorder %s20, 0
      %p208 = por %p206, %p207
      %p209 = scmp.ne.s32.totalorder %s201, %s203
      %p210 = scmp.eq.s32.totalorder %s25, 1
      %p211 = por %p209, %p210
      %p212 = scmp.ne.s32.totalorder %s203, %s204
      %p213 = scmp.eq.s32.totalorder %s25, 0
      %p214 = por %p212, %p213
      %p215 = scmp.ne.s32.totalorder %s203, %s204
      %p216 = scmp.eq.s32.totalorder %s26, 1
      %p217 = por %p215, %p216
      %p219 = scmp.ne.s32.totalorder %s204, %s218
      %p220 = scmp.eq.s32.totalorder %s26, 0
      %p221 = por %p219, %p220
      %s222 = ssub.s32 %s20, %s27
      %p223 = scmp.eq.s32.totalorder %s222, 0
      %s225 = sadd.s32 %s224, 1
      %s226 = scalar_select %p223, %s224, %s225
      %p229 = pneg %p223
      %p230 = scmp.eq.s32.totalorder %s20, 1
      %p231 = por %p229, %p230
      %p232 = scmp.ne.s32.totalorder %s224, %s227
      %p233 = scmp.eq.s32.totalorder %s20, 0
      %p234 = por %p232, %p233
      %p235 = scmp.ne.s32.totalorder %s224, %s227
      %p236 = scmp.eq.s32.totalorder %s25, 1
      %p237 = por %p235, %p236
      %p238 = scmp.ne.s32.totalorder %s227, %s228
      %p239 = scmp.eq.s32.totalorder %s25, 0
      %p240 = por %p238, %p239
      %p241 = scmp.ne.s32.totalorder %s227, %s228
      %p242 = scmp.eq.s32.totalorder %s26, 1
      %p243 = por %p241, %p242
      %p245 = scmp.ne.s32.totalorder %s228, %s244
      %p246 = scmp.eq.s32.totalorder %s26, 0
      %p247 = por %p245, %p246
      %p248 = scmp.le.s32.totalorder 1, %s20
      %p249 = scmp.lt.s32.totalorder %s20, 3
      %p250 = pnand %p248, %p249
      %p251 = pneg %p250
      // Predicated region
      $region9: #{tpu_custom_call.1} parent=5 // pred_check
        _
      $region10: #{tpu_custom_call.1} parent=5 // pred_check_branch
        %253 = sbr.rel (%p250) target = $region12
      $region11: #{tpu_custom_call.1} parent=5 // pred_region
        %s254 = ssub.s32 %s20, 1
        // Predicated region
        $region13: #{tpu_custom_call.1} parent=11 // pred_check
          %p255 = pneg %p67
        $region14: #{tpu_custom_call.1} parent=11 // pred_check_branch
          %257 = sbr.rel (%p255) target = $region16
        $region15: #{tpu_custom_call.1} parent=11 // pred_region
          _
        $region16: #{tpu_custom_call.1} parent=11 // pred_fallthru
          _
        // Predicated region
        $region17: #{tpu_custom_call.1} parent=11 // pred_check
          %p258 = pneg %p88
        $region18: #{tpu_custom_call.1} parent=11 // pred_check_branch
          %260 = sbr.rel (%p258) target = $region20
        $region19: #{tpu_custom_call.1} parent=11 // pred_region
          _
        $region20: #{tpu_custom_call.1} parent=11 // pred_fallthru
          _
        // Predicated region
        $region21: #{tpu_custom_call.1} parent=11 // pred_check
          %p261 = pneg %p109
        $region22: #{tpu_custom_call.1} parent=11 // pred_check_branch
          %263 = sbr.rel (%p261) target = $region24
        $region23: #{tpu_custom_call.1} parent=11 // pred_region
          %s265 = ssub.s32 1024, 1024
          %266 = vsyncadd [#allocation3], %s265
          %s267 = sshll.u32 [#allocation2], 4
          %s268 = int_to_ptr.vmem [resolvable:$true] %s267
          %273 = dma.hbm_to_vmem [thread:$0]  %s3, 1024, %s268, [#allocation3], 64, 64, 4
        $region24: #{tpu_custom_call.1} parent=11 // pred_fallthru
          _
        // Predicated region
        $region25: #{tpu_custom_call.1} parent=11 // pred_check
          %p274 = pneg %p130
        $region26: #{tpu_custom_call.1} parent=11 // pred_check_branch
          %276 = sbr.rel (%p274) target = $region28
        $region27: #{tpu_custom_call.1} parent=11 // pred_region
          _
        $region28: #{tpu_custom_call.1} parent=11 // pred_fallthru
          _
        // Predicated region
        $region29: #{tpu_custom_call.1} parent=11 // pred_check
          %p277 = pneg %p151
        $region30: #{tpu_custom_call.1} parent=11 // pred_check_branch
          %279 = sbr.rel (%p277) target = $region32
        $region31: #{tpu_custom_call.1} parent=11 // pred_region
          %s281 = ssub.s32 1024, 1024
          %282 = vsyncadd [#allocation6], %s281
          %s283 = sshll.u32 [#allocation5], 4
          %s284 = int_to_ptr.vmem [resolvable:$true] %s283
          %289 = dma.hbm_to_vmem [thread:$0]  %s5, 1024, %s284, [#allocation6], 64, 64, 4
        $region32: #{tpu_custom_call.1} parent=11 // pred_fallthru
          _
        // Predicated region
        $region33: #{tpu_custom_call.1} parent=11 // pred_check
          %p290 = pneg %p172
        $region34: #{tpu_custom_call.1} parent=11 // pred_check_branch
          %292 = sbr.rel (%p290) target = $region36
        $region35: #{tpu_custom_call.1} parent=11 // pred_region
          _
        $region36: #{tpu_custom_call.1} parent=11 // pred_fallthru
          _
        // Predicated region
        $region37: #{tpu_custom_call.1} parent=11 // pred_check
          %p293 = pneg %p193
        $region38: #{tpu_custom_call.1} parent=11 // pred_check_branch
          %295 = sbr.rel (%p293) target = $region40
        $region39: #{tpu_custom_call.1} parent=11 // pred_region
          %s297 = ssub.s32 1024, 1024
          %298 = vsyncadd [#allocation6], %s297
          %s299 = sshll.u32 [#allocation7], 4
          %s300 = int_to_ptr.vmem [resolvable:$true] %s299
          %305 = dma.hbm_to_vmem [thread:$0]  %s7, 1024, %s300, [#allocation6], 64, 64, 4
        $region40: #{tpu_custom_call.1} parent=11 // pred_fallthru
          _
        // Predicated region
        $region41: #{tpu_custom_call.1} parent=11 // pred_check
          %p306 = pneg %p214
        $region42: #{tpu_custom_call.1} parent=11 // pred_check_branch
          %308 = sbr.rel (%p306) target = $region44
        $region43: #{tpu_custom_call.1} parent=11 // pred_region
          _
        $region44: #{tpu_custom_call.1} parent=11 // pred_fallthru
          _
      $region12: #{tpu_custom_call.1} parent=5 // pred_fallthru
        _
      %p309 = scmp.lt.s32.totalorder %s20, 2
      // Predicated region
      $region45: #{tpu_custom_call.1} parent=5 // pred_check
        %p310 = pneg %p309
      $region46: #{tpu_custom_call.1} parent=5 // pred_check_branch
        %312 = sbr.rel (%p310) target = $region48
      $region47: #{tpu_custom_call.1} parent=5 // pred_region
        // Predicated region
        $region49: #{tpu_custom_call.1} parent=47 // pred_check
          %p313 = pneg %p40
        $region50: #{tpu_custom_call.1} parent=47 // pred_check_branch
          %315 = sbr.rel (%p313) target = $region52
        $region51: #{tpu_custom_call.1} parent=47 // pred_region
          %p316 = scmp.lt.s32.totalorder %s20, 1
          %s317 = scalar_select %p316, %s20, 1
          %s318 = smul.addr %s317, 8
          %s319 = scalar_lea.vmem %s0, %s318
        $region52: #{tpu_custom_call.1} parent=47 // pred_fallthru
          _
      $region48: #{tpu_custom_call.1} parent=5 // pred_fallthru
        _
      %p320 = scmp.le.s32.totalorder 1, %s20
      %p321 = scmp.lt.s32.totalorder %s20, 3
      %p322 = pnand %p320, %p321
      %p323 = pneg %p322
      // Predicated region
      $region53: #{tpu_custom_call.1} parent=5 // pred_check
        _
      $region54: #{tpu_custom_call.1} parent=5 // pred_check_branch
        %325 = sbr.rel (%p322) target = $region56
      $region55: #{tpu_custom_call.1} parent=5 // pred_region
        %s326 = ssub.s32 %s20, 1
        // Predicated region
        $region57: #{tpu_custom_call.1} parent=55 // pred_check
          %p327 = pneg %p109
        $region58: #{tpu_custom_call.1} parent=55 // pred_check_branch
          %329 = sbr.rel (%p327) target = $region60
        $region59: #{tpu_custom_call.1} parent=55 // pred_region
          %330 = dma.done [#allocation3], 1024
        $region60: #{tpu_custom_call.1} parent=55 // pred_fallthru
          _
        // Predicated region
        $region61: #{tpu_custom_call.1} parent=55 // pred_check
          %p331 = pneg %p151
        $region62: #{tpu_custom_call.1} parent=55 // pred_check_branch
          %333 = sbr.rel (%p331) target = $region64
        $region63: #{tpu_custom_call.1} parent=55 // pred_region
          %334 = dma.done [#allocation6], 1024
        $region64: #{tpu_custom_call.1} parent=55 // pred_fallthru
          _
        // Predicated region
        $region65: #{tpu_custom_call.1} parent=55 // pred_check
          %p335 = pneg %p193
        $region66: #{tpu_custom_call.1} parent=55 // pred_check_branch
          %337 = sbr.rel (%p335) target = $region68
        $region67: #{tpu_custom_call.1} parent=55 // pred_region
          %338 = dma.done [#allocation6], 1024
        $region68: #{tpu_custom_call.1} parent=55 // pred_fallthru
          _
        %p339 = scmp.lt.s32.totalorder %s25, 1
        %s340 = scalar_select %p339, %s25, 1
        %s341 = smul.addr %s340, 8
        %s342 = scalar_lea.vmem %s0, %s341
        %p343 = pneg %p46
        %p344 = pneg %p43
        %p345 = pneg %p67
        %p346 = pneg %p64
        %p347 = pneg %p88
        %p348 = pneg %p85
        %p349 = pneg %p109
        %p350 = pneg %p106
        %p351 = pneg %p130
        %p352 = pneg %p127
        %p353 = pneg %p151
        %p354 = pneg %p148
        %p355 = pneg %p172
        %p356 = pneg %p169
        %p357 = pneg %p193
        %p358 = pneg %p190
        %p359 = pneg %p214
        %p360 = pneg %p211
        %p361 = pneg %p240
        %p362 = pneg %p237
        %s363 = sand.u32 %s227, 1
        %s364 = scalar_lea.sflag [#allocation4], %s363
        %s365 = sand.u32 %s227, 1
        %s366 = smul.addr %s365, 8
        %s367 = scalar_lea.vmem [#allocation8], %s366
        %p368 = scmp.lt.s32.totalorder %s25, 1
        %s369 = scalar_select %p368, %s25, 1
        %s370 = smul.addr %s369, 8
        %s371 = scalar_lea.vmem %s0, %s370
        %v373 = vld [vmem:[%s371] sm:$0xff]
        %v374 = vpack.c.bf16 %v373, %v373
        %v375 = vld [vmem:[%s1] sm:$0xf]
        %v376 = vld [vmem:[%s2] sm:$0x1]
        %v378 = vlaneseq
        %v379 = vshrl.u32 %v378, 7
        %v380 = vsub.s32 0, %v379
        %v381 = vrot.slane %v376, %v380
        %vm383 = vcmask 64512
        %v385 = vsel %vm383, %v374, 0
        %vm387 = vcmask 1043456
        %v389 = vsel %vm387, %v375, 0
        %391 = vmatprep.subr.bf16.mxu0 0
        %392 = vmatpush1.bf16.msra.mxu0 0
        %393 = vmatprep.subr.bf16.mxu0 0
        %394 = vmatpush1.bf16.msra.mxu0 0
        %395 = vmatprep.subr.bf16.mxu0 0
        %396 = vmatpush1.bf16.msra.mxu0 0
        %397 = vmatprep.subr.bf16.mxu0 0
        %398 = vmatpush1.bf16.msra.mxu0 0
        %399 = vmatprep.subr.bf16.mxu0 0
        %400 = vmatpush1.bf16.msra.mxu0 0
        %401 = vmatprep.subr.bf16.mxu0 0
        %402 = vmatpush1.bf16.msra.mxu0 0
        %403 = vmatprep.subr.bf16.mxu0 0
        %404 = vmatpush1.bf16.msra.mxu0 0
        %405 = vmatprep.subr.bf16.mxu0 0
        %406 = vmatpush1.bf16.msra.mxu0 %v389
        %407 = vmatprep.subr.bf16.mxu0 0
        %408 = vmatpush2.bf16.msra.mxu0 0
        %409 = vmatprep.subr.bf16.mxu0 0
        %410 = vmatpush2.bf16.msra.mxu0 0
        %411 = vmatprep.subr.bf16.mxu0 0
        %412 = vmatpush2.bf16.msra.mxu0 0
        %413 = vmatprep.subr.bf16.mxu0 0
        %414 = vmatpush2.bf16.msra.mxu0 0
        %415 = vmatprep.subr.bf16.mxu0 0
        %416 = vmatpush2.bf16.msra.mxu0 0
        %417 = vmatprep.subr.bf16.mxu0 0
        %418 = vmatpush2.bf16.msra.mxu0 0
        %419 = vmatprep.subr.bf16.mxu0 0
        %420 = vmatpush2.bf16.msra.mxu0 0
        %421 = vmatprep.subr.bf16.mxu0 0
        %422 = vmatpush2.bf16.msra.mxu0 0
        %423 = vmatprep.mubr.bf16.mxu0 0
        %424 = vmatmul.mubr.bf16.gmra.mxu0 %v385
        %v425 = vpop.f32.mrf.mxu0
        %v426 = vadd.f32 %v381, %v425
        %v427 = vpop.f32.mrf.mxu0
        %v428 = vpop.f32.mrf.mxu0
        %v429 = vpop.f32.mrf.mxu0
        %430 = vdwg.mxu0
        %v431 = vmax.f32 %v426, 0.0
        %v432 = vpack.c.bf16 %v431, %v431
        %v433 = vld [vmem:[#allocation2] sm:$0xf]
        %v434 = vld [vmem:[#allocation2 + $0x4] sm:$0xf]
        %v435 = vld [vmem:[#allocation2 + $0x8] sm:$0xf]
        %v436 = vld [vmem:[#allocation2 + $0xc] sm:$0xf]
        %v437 = vld [vmem:[#allocation2 + $0x10] sm:$0xf]
        %v438 = vld [vmem:[#allocation2 + $0x14] sm:$0xf]
        %v439 = vld [vmem:[#allocation2 + $0x18] sm:$0xf]
        %v440 = vld [vmem:[#allocation2 + $0x1c] sm:$0xf]
        %v441 = vld [vmem:[#allocation2 + $0x20] sm:$0xf]
        %v442 = vld [vmem:[#allocation2 + $0x24] sm:$0xf]
        %v443 = vld [vmem:[#allocation2 + $0x28] sm:$0xf]
        %v444 = vld [vmem:[#allocation2 + $0x2c] sm:$0xf]
        %v445 = vld [vmem:[#allocation2 + $0x30] sm:$0xf]
        %v446 = vld [vmem:[#allocation2 + $0x34] sm:$0xf]
        %v447 = vld [vmem:[#allocation2 + $0x38] sm:$0xf]
        %v448 = vld [vmem:[#allocation2 + $0x3c] sm:$0xf]
        %v449 = vld [vmem:[%s4] sm:$0x1]
        %v451 = vlaneseq
        %v452 = vshrl.u32 %v451, 7
        %v453 = vsub.s32 0, %v452
        %v454 = vrot.slane %v449, %v453
        %v472 = vunpack.c.l.b16 %v433
        %v473 = vunpack.c.l.b16 %v434
        %v474 = vunpack.c.l.b16 %v435
        %v475 = vunpack.c.l.b16 %v436
        %v476 = vunpack.c.l.b16 %v437
        %v477 = vunpack.c.l.b16 %v438
        %v478 = vunpack.c.l.b16 %v439
        %v479 = vunpack.c.l.b16 %v440
        %v480 = vunpack.c.l.b16 %v441
        %v481 = vunpack.c.l.b16 %v442
        %v482 = vunpack.c.l.b16 %v443
        %v483 = vunpack.c.l.b16 %v444
        %v484 = vunpack.c.l.b16 %v445
        %v485 = vunpack.c.l.b16 %v446
        %v486 = vunpack.c.l.b16 %v447
        %v487 = vunpack.c.l.b16 %v448
        %v488 = vpack.c.b16 %v473, %v472
        %v489 = vpack.c.b16 %v475, %v474
        %v490 = vpack.c.b16 %v477, %v476
        %v491 = vpack.c.b16 %v479, %v478
        %v492 = vpack.c.b16 %v481, %v480
        %v493 = vpack.c.b16 %v483, %v482
        %v494 = vpack.c.b16 %v485, %v484
        %v495 = vpack.c.b16 %v487, %v486
        %504 = vmatprep.subr.bf16.mxu0 0
        %505 = vmatpush1.bf16.msra.mxu0 %v495
        %506 = vmatprep.subr.bf16.mxu0 0
        %507 = vmatpush1.bf16.msra.mxu0 %v494
        %508 = vmatprep.subr.bf16.mxu0 0
        %509 = vmatpush1.bf16.msra.mxu0 %v493
        %510 = vmatprep.subr.bf16.mxu0 0
        %511 = vmatpush1.bf16.msra.mxu0 %v492
        %512 = vmatprep.subr.bf16.mxu0 0
        %513 = vmatpush1.bf16.msra.mxu0 %v491
        %514 = vmatprep.subr.bf16.mxu0 0
        %515 = vmatpush1.bf16.msra.mxu0 %v490
        %516 = vmatprep.subr.bf16.mxu0 0
        %517 = vmatpush1.bf16.msra.mxu0 %v489
        %518 = vmatprep.subr.bf16.mxu0 0
        %519 = vmatpush1.bf16.msra.mxu0 %v488
        %520 = vmatprep.subr.bf16.mxu0 0
        %521 = vmatpush2.bf16.msra.mxu0 0
        %522 = vmatprep.subr.bf16.mxu0 0
        %523 = vmatpush2.bf16.msra.mxu0 0
        %524 = vmatprep.subr.bf16.mxu0 0
        %525 = vmatpush2.bf16.msra.mxu0 0
        %526 = vmatprep.subr.bf16.mxu0 0
        %527 = vmatpush2.bf16.msra.mxu0 0
        %528 = vmatprep.subr.bf16.mxu0 0
        %529 = vmatpush2.bf16.msra.mxu0 0
        %530 = vmatprep.subr.bf16.mxu0 0
        %531 = vmatpush2.bf16.msra.mxu0 0
        %532 = vmatprep.subr.bf16.mxu0 0
        %533 = vmatpush2.bf16.msra.mxu0 0
        %534 = vmatprep.subr.bf16.mxu0 0
        %535 = vmatpush2.bf16.msra.mxu0 0
        %536 = vmatprep.mubr.bf16.mxu0 0
        %537 = vmatmul.mubr.bf16.gmra.mxu0 %v432
        %v538 = vpop.f32.mrf.mxu0
        %v539 = vadd.f32 %v454, %v538
        %v540 = vpop.f32.mrf.mxu0
        %v541 = vpop.f32.mrf.mxu0
        %v542 = vpop.f32.mrf.mxu0
        %543 = vdwg.mxu0
        %v544 = vmax.f32 %v539, 0.0
        %v545 = vpack.c.bf16 %v544, %v544
        %v546 = vld [vmem:[#allocation5] sm:$0xf]
        %v547 = vld [vmem:[#allocation5 + $0x4] sm:$0xf]
        %v548 = vld [vmem:[#allocation5 + $0x8] sm:$0xf]
        %v549 = vld [vmem:[#allocation5 + $0xc] sm:$0xf]
        %v550 = vld [vmem:[#allocation5 + $0x10] sm:$0xf]
        %v551 = vld [vmem:[#allocation5 + $0x14] sm:$0xf]
        %v552 = vld [vmem:[#allocation5 + $0x18] sm:$0xf]
        %v553 = vld [vmem:[#allocation5 + $0x1c] sm:$0xf]
        %v554 = vld [vmem:[#allocation5 + $0x20] sm:$0xf]
        %v555 = vld [vmem:[#allocation5 + $0x24] sm:$0xf]
        %v556 = vld [vmem:[#allocation5 + $0x28] sm:$0xf]
        %v557 = vld [vmem:[#allocation5 + $0x2c] sm:$0xf]
        %v558 = vld [vmem:[#allocation5 + $0x30] sm:$0xf]
        %v559 = vld [vmem:[#allocation5 + $0x34] sm:$0xf]
        %v560 = vld [vmem:[#allocation5 + $0x38] sm:$0xf]
        %v561 = vld [vmem:[#allocation5 + $0x3c] sm:$0xf]
        %v562 = vld [vmem:[%s6] sm:$0x1]
        %v564 = vlaneseq
        %v565 = vshrl.u32 %v564, 7
        %v566 = vsub.s32 0, %v565
        %v567 = vrot.slane %v562, %v566
        %v585 = vunpack.c.l.b16 %v546
        %v586 = vunpack.c.l.b16 %v547
        %v587 = vunpack.c.l.b16 %v548
        %v588 = vunpack.c.l.b16 %v549
        %v589 = vunpack.c.l.b16 %v550
        %v590 = vunpack.c.l.b16 %v551
        %v591 = vunpack.c.l.b16 %v552
        %v592 = vunpack.c.l.b16 %v553
        %v593 = vunpack.c.l.b16 %v554
        %v594 = vunpack.c.l.b16 %v555
        %v595 = vunpack.c.l.b16 %v556
        %v596 = vunpack.c.l.b16 %v557
        %v597 = vunpack.c.l.b16 %v558
        %v598 = vunpack.c.l.b16 %v559
        %v599 = vunpack.c.l.b16 %v560
        %v600 = vunpack.c.l.b16 %v561
        %v601 = vpack.c.b16 %v586, %v585
        %v602 = vpack.c.b16 %v588, %v587
        %v603 = vpack.c.b16 %v590, %v589
        %v604 = vpack.c.b16 %v592, %v591
        %v605 = vpack.c.b16 %v594, %v593
        %v606 = vpack.c.b16 %v596, %v595
        %v607 = vpack.c.b16 %v598, %v597
        %v608 = vpack.c.b16 %v600, %v599
        %617 = vmatprep.subr.bf16.mxu0 0
        %618 = vmatpush1.bf16.msra.mxu0 %v608
        %619 = vmatprep.subr.bf16.mxu0 0
        %620 = vmatpush1.bf16.msra.mxu0 %v607
        %621 = vmatprep.subr.bf16.mxu0 0
        %622 = vmatpush1.bf16.msra.mxu0 %v606
        %623 = vmatprep.subr.bf16.mxu0 0
        %624 = vmatpush1.bf16.msra.mxu0 %v605
        %625 = vmatprep.subr.bf16.mxu0 0
        %626 = vmatpush1.bf16.msra.mxu0 %v604
        %627 = vmatprep.subr.bf16.mxu0 0
        %628 = vmatpush1.bf16.msra.mxu0 %v603
        %629 = vmatprep.subr.bf16.mxu0 0
        %630 = vmatpush1.bf16.msra.mxu0 %v602
        %631 = vmatprep.subr.bf16.mxu0 0
        %632 = vmatpush1.bf16.msra.mxu0 %v601
        %633 = vmatprep.subr.bf16.mxu0 0
        %634 = vmatpush2.bf16.msra.mxu0 0
        %635 = vmatprep.subr.bf16.mxu0 0
        %636 = vmatpush2.bf16.msra.mxu0 0
        %637 = vmatprep.subr.bf16.mxu0 0
        %638 = vmatpush2.bf16.msra.mxu0 0
        %639 = vmatprep.subr.bf16.mxu0 0
        %640 = vmatpush2.bf16.msra.mxu0 0
        %641 = vmatprep.subr.bf16.mxu0 0
        %642 = vmatpush2.bf16.msra.mxu0 0
        %643 = vmatprep.subr.bf16.mxu0 0
        %644 = vmatpush2.bf16.msra.mxu0 0
        %645 = vmatprep.subr.bf16.mxu0 0
        %646 = vmatpush2.bf16.msra.mxu0 0
        %647 = vmatprep.subr.bf16.mxu0 0
        %648 = vmatpush2.bf16.msra.mxu0 0
        %649 = vmatprep.mubr.bf16.mxu0 0
        %650 = vmatmul.mubr.bf16.gmra.mxu0 %v545
        %v651 = vpop.f32.mrf.mxu0
        %v652 = vadd.f32 %v567, %v651
        %v653 = vpop.f32.mrf.mxu0
        %v654 = vpop.f32.mrf.mxu0
        %v655 = vpop.f32.mrf.mxu0
        %656 = vdwg.mxu0
        %v657 = vadd.f32 %v652, 3.0
        %v658 = vmax.f32 %v657, 0.0
        %v659 = vmin.f32 %v658, 6.0
        %v660 = vmul.f32 %v652, %v659
        %v661 = vmul.f32 %v660, 0.16666667
        %v662 = vpack.c.bf16 %v661, %v661
        %v663 = vld [vmem:[#allocation7] sm:$0xf]
        %v664 = vld [vmem:[#allocation7 + $0x4] sm:$0xf]
        %v665 = vld [vmem:[#allocation7 + $0x8] sm:$0xf]
        %v666 = vld [vmem:[#allocation7 + $0xc] sm:$0xf]
        %v667 = vld [vmem:[#allocation7 + $0x10] sm:$0xf]
        %v668 = vld [vmem:[#allocation7 + $0x14] sm:$0xf]
        %v669 = vld [vmem:[#allocation7 + $0x18] sm:$0xf]
        %v670 = vld [vmem:[#allocation7 + $0x1c] sm:$0xf]
        %v671 = vld [vmem:[#allocation7 + $0x20] sm:$0xf]
        %v672 = vld [vmem:[#allocation7 + $0x24] sm:$0xf]
        %v673 = vld [vmem:[#allocation7 + $0x28] sm:$0xf]
        %v674 = vld [vmem:[#allocation7 + $0x2c] sm:$0xf]
        %v675 = vld [vmem:[#allocation7 + $0x30] sm:$0xf]
        %v676 = vld [vmem:[#allocation7 + $0x34] sm:$0xf]
        %v677 = vld [vmem:[#allocation7 + $0x38] sm:$0xf]
        %v678 = vld [vmem:[#allocation7 + $0x3c] sm:$0xf]
        %v679 = vld [vmem:[%s8] sm:$0x1]
        %v681 = vlaneseq
        %v682 = vshrl.u32 %v681, 7
        %v683 = vsub.s32 0, %v682
        %v684 = vrot.slane %v679, %v683
        %v702 = vunpack.c.l.b16 %v663
        %v703 = vunpack.c.l.b16 %v664
        %v704 = vunpack.c.l.b16 %v665
        %v705 = vunpack.c.l.b16 %v666
        %v706 = vunpack.c.l.b16 %v667
        %v707 = vunpack.c.l.b16 %v668
        %v708 = vunpack.c.l.b16 %v669
        %v709 = vunpack.c.l.b16 %v670
        %v710 = vunpack.c.l.b16 %v671
        %v711 = vunpack.c.l.b16 %v672
        %v712 = vunpack.c.l.b16 %v673
        %v713 = vunpack.c.l.b16 %v674
        %v714 = vunpack.c.l.b16 %v675
        %v715 = vunpack.c.l.b16 %v676
        %v716 = vunpack.c.l.b16 %v677
        %v717 = vunpack.c.l.b16 %v678
        %v718 = vpack.c.b16 %v703, %v702
        %v719 = vpack.c.b16 %v705, %v704
        %v720 = vpack.c.b16 %v707, %v706
        %v721 = vpack.c.b16 %v709, %v708
        %v722 = vpack.c.b16 %v711, %v710
        %v723 = vpack.c.b16 %v713, %v712
        %v724 = vpack.c.b16 %v715, %v714
        %v725 = vpack.c.b16 %v717, %v716
        %734 = vmatprep.subr.bf16.mxu0 0
        %735 = vmatpush1.bf16.msra.mxu0 %v725
        %736 = vmatprep.subr.bf16.mxu0 0
        %737 = vmatpush1.bf16.msra.mxu0 %v724
        %738 = vmatprep.subr.bf16.mxu0 0
        %739 = vmatpush1.bf16.msra.mxu0 %v723
        %740 = vmatprep.subr.bf16.mxu0 0
        %741 = vmatpush1.bf16.msra.mxu0 %v722
        %742 = vmatprep.subr.bf16.mxu0 0
        %743 = vmatpush1.bf16.msra.mxu0 %v721
        %744 = vmatprep.subr.bf16.mxu0 0
        %745 = vmatpush1.bf16.msra.mxu0 %v720
        %746 = vmatprep.subr.bf16.mxu0 0
        %747 = vmatpush1.bf16.msra.mxu0 %v719
        %748 = vmatprep.subr.bf16.mxu0 0
        %749 = vmatpush1.bf16.msra.mxu0 %v718
        %750 = vmatprep.subr.bf16.mxu0 0
        %751 = vmatpush2.bf16.msra.mxu0 0
        %752 = vmatprep.subr.bf16.mxu0 0
        %753 = vmatpush2.bf16.msra.mxu0 0
        %754 = vmatprep.subr.bf16.mxu0 0
        %755 = vmatpush2.bf16.msra.mxu0 0
        %756 = vmatprep.subr.bf16.mxu0 0
        %757 = vmatpush2.bf16.msra.mxu0 0
        %758 = vmatprep.subr.bf16.mxu0 0
        %759 = vmatpush2.bf16.msra.mxu0 0
        %760 = vmatprep.subr.bf16.mxu0 0
        %761 = vmatpush2.bf16.msra.mxu0 0
        %762 = vmatprep.subr.bf16.mxu0 0
        %763 = vmatpush2.bf16.msra.mxu0 0
        %764 = vmatprep.subr.bf16.mxu0 0
        %765 = vmatpush2.bf16.msra.mxu0 0
        %766 = vmatprep.mubr.bf16.mxu0 0
        %767 = vmatmul.mubr.bf16.gmra.mxu0 %v662
        %v768 = vpop.f32.mrf.mxu0
        %v769 = vadd.f32 %v684, %v768
        %v770 = vpop.f32.mrf.mxu0
        %v771 = vpop.f32.mrf.mxu0
        %v772 = vpop.f32.mrf.mxu0
        %773 = vdwg.mxu0
        %774 = vst [vmem:[%s367] sm:$0xff] %v769
        %s775 = sand.u32 %s227, 1
        %s776 = scalar_lea.sflag [#allocation4], %s775
        %s777 = sand.u32 %s227, 1
        %s778 = smul.addr %s777, 8
        %s779 = scalar_lea.vmem [#allocation8], %s778
        // Predicated region
        $region69: #{tpu_custom_call.1} parent=55 // pred_check
          %p780 = pneg %p237
        $region70: #{tpu_custom_call.1} parent=55 // pred_check_branch
          %782 = sbr.rel (%p780) target = $region72
        $region71: #{tpu_custom_call.1} parent=55 // pred_region
          %s784 = ssub.s32 128, 128
          %785 = vsyncadd %s776, %s784
          %s786 = smul.addr %s25, 128
          %s787 = scalar_lea.hbm %s9, %s786
          %s789 = sshll.u32 %s779, 4
          %s790 = int_to_ptr.vmem [resolvable:$true] %s789
          %792 = dma.vmem_to_hbm [thread:$0]  %s790, 128, %s787, %s776
        $region72: #{tpu_custom_call.1} parent=55 // pred_fallthru
          _
      $region56: #{tpu_custom_call.1} parent=5 // pred_fallthru
        _
      %p793 = scmp.le.s32.totalorder 2, %s20
      // Predicated region
      $region73: #{tpu_custom_call.1} parent=5 // pred_check
        %p794 = pneg %p793
      $region74: #{tpu_custom_call.1} parent=5 // pred_check_branch
        %796 = sbr.rel (%p794) target = $region76
      $region75: #{tpu_custom_call.1} parent=5 // pred_region
        %s797 = ssub.s32 %s20, 2
        // Predicated region
        $region77: #{tpu_custom_call.1} parent=75 // pred_check
          %p798 = pneg %p243
        $region78: #{tpu_custom_call.1} parent=75 // pred_check_branch
          %800 = sbr.rel (%p798) target = $region80
        $region79: #{tpu_custom_call.1} parent=75 // pred_region
          %s801 = sand.u32 %s228, 1
          %s802 = scalar_lea.sflag [#allocation4], %s801
          %s803 = sand.u32 %s228, 1
          %s804 = smul.addr %s803, 8
          %s805 = scalar_lea.vmem [#allocation8], %s804
          %806 = dma.done %s802, 128
        $region80: #{tpu_custom_call.1} parent=75 // pred_fallthru
          _
      $region76: #{tpu_custom_call.1} parent=5 // pred_fallthru
        _
    $region6: #{tpu_custom_call.1} parent=1 // loop_footer
      %s24 = sadd.s32 1, %s20
    $region7: #{tpu_custom_call.1} parent=1 // loop_footer_branch
      %19 = sbr.rel target = $region3
    $region8: #{tpu_custom_call.1} parent=1 // loop_exit
      _
    %807 = vsyncpa [#allocation3], 1
    %s808 = scalar_lea.sflag [#allocation3], 1
    %809 = vsyncpa %s808, 1
    %810 = vsyncpa [#allocation6], 1
    %811 = vsyncpa [#allocation4], 1
    %s812 = scalar_lea.sflag [#allocation4], 1
    %813 = vsyncpa %s812, 1

</llo_original>
